<compile_context>
chip_gen: v6e
topology: v6e:2x2x1
jax: 0.10.0
libtpu: 0.0.40
codegen_flags: <defaults>
</compile_context>

<pallas_src>
import functools

import jax
import jax.numpy as jnp
from jax import lax
from jax.experimental import pallas as pl
from jax.experimental.pallas import tpu as pltpu


def _round_up(x, m):
    return -(-x // m) * m


def _hn_loss_kernel(mask_ref, img_hbm, txt_hbm, out_ref,
                    ibuf, pbuf, nbuf, sems,
                    *, off_img, off_pos, off_neg, vg, tm, rem, nblk):
    """One row block: DMA (rows, D) tiles from the HBM tails, reduce to
    a lane-dense (1, 2, 128) partial [num, den]."""
    i = pl.program_id(0)

    def _start(off):
        s = off + i * tm
        if off % 8 == 0:            # tm is always a multiple of 8
            s = pl.multiple_of(s, 8)
        return s

    def _fetch(nrows):
        cps = (
            pltpu.make_async_copy(
                img_hbm.at[pl.ds(_start(off_img), nrows), :],
                ibuf.at[pl.ds(0, nrows), :], sems.at[0]),
            pltpu.make_async_copy(
                txt_hbm.at[pl.ds(_start(off_pos), nrows), :],
                pbuf.at[pl.ds(0, nrows), :], sems.at[1]),
            pltpu.make_async_copy(
                txt_hbm.at[pl.ds(_start(off_neg), nrows), :],
                nbuf.at[pl.ds(0, nrows), :], sems.at[2]),
        )
        for c in cps:
            c.start()
        for c in cps:
            c.wait()

    # TODO(synk): cross-step double-buffering of these copies would hide the
    # (~10%) in-kernel compute under DMA; skipped to stay megacore-safe.
    if rem == tm:                   # vg divides tm: every block is full
        _fetch(tm)
    else:
        @pl.when(i < nblk - 1)
        def _():
            _fetch(tm)

        @pl.when(i == nblk - 1)
        def _():
            _fetch(rem)             # ragged tail: never read past the arrays

    # diff = diag(img @ neg.T) - diag(img @ pos.T), f32 accumulation.
    dif = nbuf[...] - pbuf[...]                               # input dtype
    prod = dif.astype(jnp.float32) * ibuf[...].astype(jnp.float32)
    diff = jnp.sum(prod, axis=-1, keepdims=True)              # (tm, 1) f32

    # -log(exp(ps)/(exp(ps)+exp(ns))) == softplus(ns - ps), stable form.
    loss = jnp.maximum(diff, 0.0) + jnp.log1p(jnp.exp(-jnp.abs(diff)))

    # Rows >= vg come from stale/uninitialized VMEM -> select them to exactly
    # 0 before the weighted sum (a multiply by 0 would still propagate NaN).
    row = i * tm + lax.broadcasted_iota(jnp.int32, (tm, 1), 0)
    mask = mask_ref[...]                                      # (tm, 1) f32
    loss = jnp.where(row < vg, loss, 0.0) * mask

    num = jnp.sum(loss)
    den = jnp.sum(mask)             # padded mask rows are 0

    # Lane-dense (1, 2, 128) partial: sublane 0 = num, sublane 1 = den.
    sub = lax.broadcasted_iota(jnp.int32, out_ref.shape, 1)
    out_ref[...] = jnp.where(sub == 0, num, den)


def hn_loss(image_features, text_features, ignore_mask, vg_batch_size,
            alpha=1.0, block_rows=1024):
    """JAX/Pallas equivalent of HNLoss.forward.

    image_features: (N_img, D)   (last vg rows are the VG images)
    text_features : (N_txt, D)   (last 2*vg rows = [positives ; negatives])
    ignore_mask   : (vg,)
    vg_batch_size : python int (static)

    Features may be bf16 (recommended for bandwidth) or f32; math is done in
    f32 inside the kernel either way.
    """
    vg = int(vg_batch_size)
    n_img, d = image_features.shape
    n_txt, d_t = text_features.shape
    assert d == d_t, "image/text hidden dims must match"
    assert image_features.dtype == text_features.dtype, "feature dtypes must match"
    assert n_img >= vg and n_txt >= 2 * vg, "not enough rows for vg_batch_size"
    itemsize = jnp.dtype(image_features.dtype).itemsize

    # Static tail offsets (identical to the PyTorch negative indexing).
    off_img = n_img - vg
    off_pos = n_txt - 2 * vg
    off_neg = n_txt - vg

    # --- row tile selection -------------------------------------------------
    # Per-row VMEM: 3 input tiles (input dtype) + ~4 full-width f32
    # temporaries from the upcast / (neg-pos) / product chain.
    per_row = 3 * d * itemsize + 4 * d * 4
    budget = 28 * 1024 * 1024            # buffers+temps; headroom under limit
    tm_cap = max(8, (budget // per_row) // 8 * 8)
    tm = max(8, (min(block_rows, tm_cap) // 8) * 8)
    if _round_up(vg, 8) <= 8:
        tm = 8
    else:
        # Keep >= 2 row blocks so the "parallel" axis can use both v7x cores.
        tm = min(tm, max(8, _round_up(-(-vg // 2), 8)))
    nblk = -(-vg // tm)
    rem = vg - (nblk - 1) * tm

    # Mask: the only wrapper-side copy (tiny). Pad rows to nblk*tm with zeros.
    mask2d = ignore_mask.astype(jnp.float32).reshape(vg, 1)
    vg_pad = nblk * tm
    if vg_pad != vg:
        mask2d = jnp.pad(mask2d, ((0, vg_pad - vg), (0, 0)))
    # TODO(synk): pass the mask lane-dense (or via SMEM) to shave its padded
    # HBM footprint; only a few-% effect for D >= 1024.

    kernel = functools.partial(
        _hn_loss_kernel,
        off_img=off_img, off_pos=off_pos, off_neg=off_neg,
        vg=vg, tm=tm, rem=rem, nblk=nblk)

    partials = pl.pallas_call(
        kernel,
        out_shape=jax.ShapeDtypeStruct((nblk, 2, 128), jnp.float32),
        grid_spec=pltpu.PrefetchScalarGridSpec(
            num_scalar_prefetch=0,
            grid=(nblk,),
            in_specs=[
                pl.BlockSpec((tm, 1), lambda i: (i, 0)),      # mask (VMEM)
                pl.BlockSpec(memory_space=pl.ANY),            # image_features
                pl.BlockSpec(memory_space=pl.ANY),            # text_features
            ],
            out_specs=pl.BlockSpec((1, 2, 128), lambda i: (i, 0, 0)),
            scratch_shapes=[
                pltpu.VMEM((tm, d), image_features.dtype),    # img tile
                pltpu.VMEM((tm, d), text_features.dtype),     # pos tile
                pltpu.VMEM((tm, d), text_features.dtype),     # neg tile
                pltpu.SemaphoreType.DMA((3,)),
            ]),
        compiler_params=pltpu.CompilerParams(
            dimension_semantics=("parallel",),
            vmem_limit_bytes=48 * 1024 * 1024,
        ),
    )(mask2d, image_features, text_features)

    num = jnp.sum(partials[:, 0, 0])
    den = jnp.sum(partials[:, 1, 0])
    return jnp.float32(alpha) * num / den


if __name__ == "__main__":
    key = jax.random.PRNGKey(0)
    k1, k2, k3 = jax.random.split(key, 3)

    # Small but representative shapes: plain batch 16, vg batch 24, hidden 128.
    # Offsets (16, 16, 40) are multiples of 8; vg=24 exercises the multi-block
    # grid (tm=16 -> 2 blocks) and the ragged tail path (rem=8).
    vg_batch_size = 24
    hidden = 128
    n_img = 16 + vg_batch_size            # plain batch + vg images
    n_txt = 16 + 2 * vg_batch_size        # plain batch + vg positives + vg negatives

    image_features = 0.5 * jax.random.normal(k1, (n_img, hidden), dtype=jnp.float32)
    text_features = 0.5 * jax.random.normal(k2, (n_txt, hidden), dtype=jnp.float32)
    ignore_mask = (jax.random.uniform(k3, (vg_batch_size,)) > 0.3).astype(jnp.float32)
    ignore_mask = ignore_mask.at[0].set(1.0)   # guarantee non-zero denominator

    loss = hn_loss(image_features, text_features, ignore_mask, vg_batch_size, alpha=1.0)
    loss = jax.block_until_ready(loss)

    # Pure-JAX reference mirroring the PyTorch math exactly.
    vg_img = image_features[-vg_batch_size:]
    pos = text_features[-2 * vg_batch_size:-vg_batch_size]
    neg = text_features[-vg_batch_size:]
    ps = jnp.exp(jnp.sum(vg_img * pos, axis=-1))
    ns = jnp.exp(jnp.sum(vg_img * neg, axis=-1))
    lps = -jnp.log(ps / (ps + ns))
    ref = 1.0 * jnp.dot(lps, ignore_mask) / jnp.sum(ignore_mask)

    assert jnp.allclose(loss, ref, atol=1e-5, rtol=1e-4), (loss, ref)
    print("KERNEL_OK")
</pallas_src>

<mosaic_0001>
module attributes {stable_mosaic.version = 11 : i64} {
  func.func @_hn_loss_kernel(%arg0: i32, %arg1: memref<16x1xf32, #tpu.memory_space<vmem>>, %arg2: memref<40x128xf32, #tpu.memory_space<any>>, %arg3: memref<64x128xf32, #tpu.memory_space<any>>, %arg4: memref<1x2x128xf32, #tpu.memory_space<vmem>>, %arg5: memref<16x128xf32, #tpu.memory_space<vmem>>, %arg6: memref<16x128xf32, #tpu.memory_space<vmem>>, %arg7: memref<16x128xf32, #tpu.memory_space<vmem>>, %arg8: memref<3x!tpu.dma_semaphore, #tpu.memory_space<semaphore_mem>>) attributes {dimension_semantics = [#tpu.dimension_semantics<parallel>], iteration_bounds = array<i64: 2>, scalar_prefetch = 0 : i64, scratch_operands = 4 : i64, tpu.core_type = #tpu.core_type<tc>, window_params = [{transform_indices = @transform_0, window_bounds = array<i64: 16, 1>}, {}, {}, {transform_indices = @transform_3, window_bounds = array<i64: 1, 2, 128>}]} {
    %c1_i32 = arith.constant 1 : i32
    %0 = arith.cmpi slt, %arg0, %c1_i32 : i32
    %1 = arith.extui %0 : i1 to i32
    %c0_i32 = arith.constant 0 : i32
    %2 = arith.cmpi ne, %1, %c0_i32 : i32
    scf.if %2 {
      %c16_i32_18 = arith.constant 16 : i32
      %46 = arith.muli %arg0, %c16_i32_18 : i32
      %c16_i32_19 = arith.constant 16 : i32
      %47 = arith.addi %c16_i32_19, %46 : i32
      %48 = tpu.assume_multiple %47, 8 : i32
      %c16_i32_20 = arith.constant 16 : i32
      %49 = arith.muli %arg0, %c16_i32_20 : i32
      %c16_i32_21 = arith.constant 16 : i32
      %50 = arith.addi %c16_i32_21, %49 : i32
      %51 = tpu.assume_multiple %50, 8 : i32
      %c16_i32_22 = arith.constant 16 : i32
      %52 = arith.muli %arg0, %c16_i32_22 : i32
      %c40_i32 = arith.constant 40 : i32
      %53 = arith.addi %c40_i32, %52 : i32
      %54 = tpu.assume_multiple %53, 8 : i32
      %c0_i32_23 = arith.constant 0 : i32
      %c0_i32_24 = arith.constant 0 : i32
      %55 = tpu.memref_slice %arg2[%48, %c0_i32_24] : memref<40x128xf32, #tpu.memory_space<any>> -> memref<16x128xf32, #tpu.memory_space<any>>
      %c0_i32_25 = arith.constant 0 : i32
      %c0_i32_26 = arith.constant 0 : i32
      %56 = tpu.memref_slice %arg5[%c0_i32_25, %c0_i32_26] : memref<16x128xf32, #tpu.memory_space<vmem>> -> memref<16x128xf32, #tpu.memory_space<vmem>>
      %57 = tpu.memref_slice %arg8[%c0_i32_23] : memref<3x!tpu.dma_semaphore, #tpu.memory_space<semaphore_mem>> -> memref<1x!tpu.dma_semaphore, #tpu.memory_space<semaphore_mem>>
      %58 = tpu.memref_squeeze %57 : memref<1x!tpu.dma_semaphore, #tpu.memory_space<semaphore_mem>> -> memref<!tpu.dma_semaphore, #tpu.memory_space<semaphore_mem>>
      tpu.enqueue_dma source(%55 : memref<16x128xf32, #tpu.memory_space<any>>) target(%56 : memref<16x128xf32, #tpu.memory_space<vmem>>) target_semaphore(%58 : memref<!tpu.dma_semaphore, #tpu.memory_space<semaphore_mem>>)
      %c1_i32_27 = arith.constant 1 : i32
      %c0_i32_28 = arith.constant 0 : i32
      %59 = tpu.memref_slice %arg3[%51, %c0_i32_28] : memref<64x128xf32, #tpu.memory_space<any>> -> memref<16x128xf32, #tpu.memory_space<any>>
      %c0_i32_29 = arith.constant 0 : i32
      %c0_i32_30 = arith.constant 0 : i32
      %60 = tpu.memref_slice %arg6[%c0_i32_29, %c0_i32_30] : memref<16x128xf32, #tpu.memory_space<vmem>> -> memref<16x128xf32, #tpu.memory_space<vmem>>
      %61 = tpu.memref_slice %arg8[%c1_i32_27] : memref<3x!tpu.dma_semaphore, #tpu.memory_space<semaphore_mem>> -> memref<1x!tpu.dma_semaphore, #tpu.memory_space<semaphore_mem>>
      %62 = tpu.memref_squeeze %61 : memref<1x!tpu.dma_semaphore, #tpu.memory_space<semaphore_mem>> -> memref<!tpu.dma_semaphore, #tpu.memory_space<semaphore_mem>>
      tpu.enqueue_dma source(%59 : memref<16x128xf32, #tpu.memory_space<any>>) target(%60 : memref<16x128xf32, #tpu.memory_space<vmem>>) target_semaphore(%62 : memref<!tpu.dma_semaphore, #tpu.memory_space<semaphore_mem>>)
      %c2_i32 = arith.constant 2 : i32
      %c0_i32_31 = arith.constant 0 : i32
      %63 = tpu.memref_slice %arg3[%54, %c0_i32_31] : memref<64x128xf32, #tpu.memory_space<any>> -> memref<16x128xf32, #tpu.memory_space<any>>
      %c0_i32_32 = arith.constant 0 : i32
      %c0_i32_33 = arith.constant 0 : i32
      %64 = tpu.memref_slice %arg7[%c0_i32_32, %c0_i32_33] : memref<16x128xf32, #tpu.memory_space<vmem>> -> memref<16x128xf32, #tpu.memory_space<vmem>>
      %65 = tpu.memref_slice %arg8[%c2_i32] : memref<3x!tpu.dma_semaphore, #tpu.memory_space<semaphore_mem>> -> memref<1x!tpu.dma_semaphore, #tpu.memory_space<semaphore_mem>>
      %66 = tpu.memref_squeeze %65 : memref<1x!tpu.dma_semaphore, #tpu.memory_space<semaphore_mem>> -> memref<!tpu.dma_semaphore, #tpu.memory_space<semaphore_mem>>
      tpu.enqueue_dma source(%63 : memref<16x128xf32, #tpu.memory_space<any>>) target(%64 : memref<16x128xf32, #tpu.memory_space<vmem>>) target_semaphore(%66 : memref<!tpu.dma_semaphore, #tpu.memory_space<semaphore_mem>>)
      %c0_i32_34 = arith.constant 0 : i32
      %c0_i32_35 = arith.constant 0 : i32
      %67 = tpu.memref_slice %arg2[%48, %c0_i32_35] : memref<40x128xf32, #tpu.memory_space<any>> -> memref<16x128xf32, #tpu.memory_space<any>>
      %c0_i32_36 = arith.constant 0 : i32
      %c0_i32_37 = arith.constant 0 : i32
      %68 = tpu.memref_slice %arg5[%c0_i32_36, %c0_i32_37] : memref<16x128xf32, #tpu.memory_space<vmem>> -> memref<16x128xf32, #tpu.memory_space<vmem>>
      %69 = tpu.memref_slice %arg8[%c0_i32_34] : memref<3x!tpu.dma_semaphore, #tpu.memory_space<semaphore_mem>> -> memref<1x!tpu.dma_semaphore, #tpu.memory_space<semaphore_mem>>
      %70 = tpu.memref_squeeze %69 : memref<1x!tpu.dma_semaphore, #tpu.memory_space<semaphore_mem>> -> memref<!tpu.dma_semaphore, #tpu.memory_space<semaphore_mem>>
      tpu.wait_dma2 semaphore(%70 : memref<!tpu.dma_semaphore, #tpu.memory_space<semaphore_mem>>) src(%67 : memref<16x128xf32, #tpu.memory_space<any>>) dst(%68 : memref<16x128xf32, #tpu.memory_space<vmem>>)
      %c1_i32_38 = arith.constant 1 : i32
      %c0_i32_39 = arith.constant 0 : i32
      %71 = tpu.memref_slice %arg3[%51, %c0_i32_39] : memref<64x128xf32, #tpu.memory_space<any>> -> memref<16x128xf32, #tpu.memory_space<any>>
      %c0_i32_40 = arith.constant 0 : i32
      %c0_i32_41 = arith.constant 0 : i32
      %72 = tpu.memref_slice %arg6[%c0_i32_40, %c0_i32_41] : memref<16x128xf32, #tpu.memory_space<vmem>> -> memref<16x128xf32, #tpu.memory_space<vmem>>
      %73 = tpu.memref_slice %arg8[%c1_i32_38] : memref<3x!tpu.dma_semaphore, #tpu.memory_space<semaphore_mem>> -> memref<1x!tpu.dma_semaphore, #tpu.memory_space<semaphore_mem>>
      %74 = tpu.memref_squeeze %73 : memref<1x!tpu.dma_semaphore, #tpu.memory_space<semaphore_mem>> -> memref<!tpu.dma_semaphore, #tpu.memory_space<semaphore_mem>>
      tpu.wait_dma2 semaphore(%74 : memref<!tpu.dma_semaphore, #tpu.memory_space<semaphore_mem>>) src(%71 : memref<16x128xf32, #tpu.memory_space<any>>) dst(%72 : memref<16x128xf32, #tpu.memory_space<vmem>>)
      %c2_i32_42 = arith.constant 2 : i32
      %c0_i32_43 = arith.constant 0 : i32
      %75 = tpu.memref_slice %arg3[%54, %c0_i32_43] : memref<64x128xf32, #tpu.memory_space<any>> -> memref<16x128xf32, #tpu.memory_space<any>>
      %c0_i32_44 = arith.constant 0 : i32
      %c0_i32_45 = arith.constant 0 : i32
      %76 = tpu.memref_slice %arg7[%c0_i32_44, %c0_i32_45] : memref<16x128xf32, #tpu.memory_space<vmem>> -> memref<16x128xf32, #tpu.memory_space<vmem>>
      %77 = tpu.memref_slice %arg8[%c2_i32_42] : memref<3x!tpu.dma_semaphore, #tpu.memory_space<semaphore_mem>> -> memref<1x!tpu.dma_semaphore, #tpu.memory_space<semaphore_mem>>
      %78 = tpu.memref_squeeze %77 : memref<1x!tpu.dma_semaphore, #tpu.memory_space<semaphore_mem>> -> memref<!tpu.dma_semaphore, #tpu.memory_space<semaphore_mem>>
      tpu.wait_dma2 semaphore(%78 : memref<!tpu.dma_semaphore, #tpu.memory_space<semaphore_mem>>) src(%75 : memref<16x128xf32, #tpu.memory_space<any>>) dst(%76 : memref<16x128xf32, #tpu.memory_space<vmem>>)
    } else {
    }
    %c1_i32_0 = arith.constant 1 : i32
    %3 = arith.cmpi eq, %arg0, %c1_i32_0 : i32
    %4 = arith.extui %3 : i1 to i32
    %c0_i32_1 = arith.constant 0 : i32
    %5 = arith.cmpi ne, %4, %c0_i32_1 : i32
    scf.if %5 {
      %c16_i32_18 = arith.constant 16 : i32
      %46 = arith.muli %arg0, %c16_i32_18 : i32
      %c16_i32_19 = arith.constant 16 : i32
      %47 = arith.addi %c16_i32_19, %46 : i32
      %48 = tpu.assume_multiple %47, 8 : i32
      %c16_i32_20 = arith.constant 16 : i32
      %49 = arith.muli %arg0, %c16_i32_20 : i32
      %c16_i32_21 = arith.constant 16 : i32
      %50 = arith.addi %c16_i32_21, %49 : i32
      %51 = tpu.assume_multiple %50, 8 : i32
      %c16_i32_22 = arith.constant 16 : i32
      %52 = arith.muli %arg0, %c16_i32_22 : i32
      %c40_i32 = arith.constant 40 : i32
      %53 = arith.addi %c40_i32, %52 : i32
      %54 = tpu.assume_multiple %53, 8 : i32
      %c0_i32_23 = arith.constant 0 : i32
      %c0_i32_24 = arith.constant 0 : i32
      %55 = tpu.memref_slice %arg2[%48, %c0_i32_24] : memref<40x128xf32, #tpu.memory_space<any>> -> memref<8x128xf32, #tpu.memory_space<any>>
      %c0_i32_25 = arith.constant 0 : i32
      %c0_i32_26 = arith.constant 0 : i32
      %56 = tpu.memref_slice %arg5[%c0_i32_25, %c0_i32_26] : memref<16x128xf32, #tpu.memory_space<vmem>> -> memref<8x128xf32, #tpu.memory_space<vmem>>
      %57 = tpu.memref_slice %arg8[%c0_i32_23] : memref<3x!tpu.dma_semaphore, #tpu.memory_space<semaphore_mem>> -> memref<1x!tpu.dma_semaphore, #tpu.memory_space<semaphore_mem>>
      %58 = tpu.memref_squeeze %57 : memref<1x!tpu.dma_semaphore, #tpu.memory_space<semaphore_mem>> -> memref<!tpu.dma_semaphore, #tpu.memory_space<semaphore_mem>>
      tpu.enqueue_dma source(%55 : memref<8x128xf32, #tpu.memory_space<any>>) target(%56 : memref<8x128xf32, #tpu.memory_space<vmem>>) target_semaphore(%58 : memref<!tpu.dma_semaphore, #tpu.memory_space<semaphore_mem>>)
      %c1_i32_27 = arith.constant 1 : i32
      %c0_i32_28 = arith.constant 0 : i32
      %59 = tpu.memref_slice %arg3[%51, %c0_i32_28] : memref<64x128xf32, #tpu.memory_space<any>> -> memref<8x128xf32, #tpu.memory_space<any>>
      %c0_i32_29 = arith.constant 0 : i32
      %c0_i32_30 = arith.constant 0 : i32
      %60 = tpu.memref_slice %arg6[%c0_i32_29, %c0_i32_30] : memref<16x128xf32, #tpu.memory_space<vmem>> -> memref<8x128xf32, #tpu.memory_space<vmem>>
      %61 = tpu.memref_slice %arg8[%c1_i32_27] : memref<3x!tpu.dma_semaphore, #tpu.memory_space<semaphore_mem>> -> memref<1x!tpu.dma_semaphore, #tpu.memory_space<semaphore_mem>>
      %62 = tpu.memref_squeeze %61 : memref<1x!tpu.dma_semaphore, #tpu.memory_space<semaphore_mem>> -> memref<!tpu.dma_semaphore, #tpu.memory_space<semaphore_mem>>
      tpu.enqueue_dma source(%59 : memref<8x128xf32, #tpu.memory_space<any>>) target(%60 : memref<8x128xf32, #tpu.memory_space<vmem>>) target_semaphore(%62 : memref<!tpu.dma_semaphore, #tpu.memory_space<semaphore_mem>>)
      %c2_i32 = arith.constant 2 : i32
      %c0_i32_31 = arith.constant 0 : i32
      %63 = tpu.memref_slice %arg3[%54, %c0_i32_31] : memref<64x128xf32, #tpu.memory_space<any>> -> memref<8x128xf32, #tpu.memory_space<any>>
      %c0_i32_32 = arith.constant 0 : i32
      %c0_i32_33 = arith.constant 0 : i32
      %64 = tpu.memref_slice %arg7[%c0_i32_32, %c0_i32_33] : memref<16x128xf32, #tpu.memory_space<vmem>> -> memref<8x128xf32, #tpu.memory_space<vmem>>
      %65 = tpu.memref_slice %arg8[%c2_i32] : memref<3x!tpu.dma_semaphore, #tpu.memory_space<semaphore_mem>> -> memref<1x!tpu.dma_semaphore, #tpu.memory_space<semaphore_mem>>
      %66 = tpu.memref_squeeze %65 : memref<1x!tpu.dma_semaphore, #tpu.memory_space<semaphore_mem>> -> memref<!tpu.dma_semaphore, #tpu.memory_space<semaphore_mem>>
      tpu.enqueue_dma source(%63 : memref<8x128xf32, #tpu.memory_space<any>>) target(%64 : memref<8x128xf32, #tpu.memory_space<vmem>>) target_semaphore(%66 : memref<!tpu.dma_semaphore, #tpu.memory_space<semaphore_mem>>)
      %c0_i32_34 = arith.constant 0 : i32
      %c0_i32_35 = arith.constant 0 : i32
      %67 = tpu.memref_slice %arg2[%48, %c0_i32_35] : memref<40x128xf32, #tpu.memory_space<any>> -> memref<8x128xf32, #tpu.memory_space<any>>
      %c0_i32_36 = arith.constant 0 : i32
      %c0_i32_37 = arith.constant 0 : i32
      %68 = tpu.memref_slice %arg5[%c0_i32_36, %c0_i32_37] : memref<16x128xf32, #tpu.memory_space<vmem>> -> memref<8x128xf32, #tpu.memory_space<vmem>>
      %69 = tpu.memref_slice %arg8[%c0_i32_34] : memref<3x!tpu.dma_semaphore, #tpu.memory_space<semaphore_mem>> -> memref<1x!tpu.dma_semaphore, #tpu.memory_space<semaphore_mem>>
      %70 = tpu.memref_squeeze %69 : memref<1x!tpu.dma_semaphore, #tpu.memory_space<semaphore_mem>> -> memref<!tpu.dma_semaphore, #tpu.memory_space<semaphore_mem>>
      tpu.wait_dma2 semaphore(%70 : memref<!tpu.dma_semaphore, #tpu.memory_space<semaphore_mem>>) src(%67 : memref<8x128xf32, #tpu.memory_space<any>>) dst(%68 : memref<8x128xf32, #tpu.memory_space<vmem>>)
      %c1_i32_38 = arith.constant 1 : i32
      %c0_i32_39 = arith.constant 0 : i32
      %71 = tpu.memref_slice %arg3[%51, %c0_i32_39] : memref<64x128xf32, #tpu.memory_space<any>> -> memref<8x128xf32, #tpu.memory_space<any>>
      %c0_i32_40 = arith.constant 0 : i32
      %c0_i32_41 = arith.constant 0 : i32
      %72 = tpu.memref_slice %arg6[%c0_i32_40, %c0_i32_41] : memref<16x128xf32, #tpu.memory_space<vmem>> -> memref<8x128xf32, #tpu.memory_space<vmem>>
      %73 = tpu.memref_slice %arg8[%c1_i32_38] : memref<3x!tpu.dma_semaphore, #tpu.memory_space<semaphore_mem>> -> memref<1x!tpu.dma_semaphore, #tpu.memory_space<semaphore_mem>>
      %74 = tpu.memref_squeeze %73 : memref<1x!tpu.dma_semaphore, #tpu.memory_space<semaphore_mem>> -> memref<!tpu.dma_semaphore, #tpu.memory_space<semaphore_mem>>
      tpu.wait_dma2 semaphore(%74 : memref<!tpu.dma_semaphore, #tpu.memory_space<semaphore_mem>>) src(%71 : memref<8x128xf32, #tpu.memory_space<any>>) dst(%72 : memref<8x128xf32, #tpu.memory_space<vmem>>)
      %c2_i32_42 = arith.constant 2 : i32
      %c0_i32_43 = arith.constant 0 : i32
      %75 = tpu.memref_slice %arg3[%54, %c0_i32_43] : memref<64x128xf32, #tpu.memory_space<any>> -> memref<8x128xf32, #tpu.memory_space<any>>
      %c0_i32_44 = arith.constant 0 : i32
      %c0_i32_45 = arith.constant 0 : i32
      %76 = tpu.memref_slice %arg7[%c0_i32_44, %c0_i32_45] : memref<16x128xf32, #tpu.memory_space<vmem>> -> memref<8x128xf32, #tpu.memory_space<vmem>>
      %77 = tpu.memref_slice %arg8[%c2_i32_42] : memref<3x!tpu.dma_semaphore, #tpu.memory_space<semaphore_mem>> -> memref<1x!tpu.dma_semaphore, #tpu.memory_space<semaphore_mem>>
      %78 = tpu.memref_squeeze %77 : memref<1x!tpu.dma_semaphore, #tpu.memory_space<semaphore_mem>> -> memref<!tpu.dma_semaphore, #tpu.memory_space<semaphore_mem>>
      tpu.wait_dma2 semaphore(%78 : memref<!tpu.dma_semaphore, #tpu.memory_space<semaphore_mem>>) src(%75 : memref<8x128xf32, #tpu.memory_space<any>>) dst(%76 : memref<8x128xf32, #tpu.memory_space<vmem>>)
    } else {
    }
    %c0 = arith.constant 0 : index
    %c0_2 = arith.constant 0 : index
    %6 = vector.load %arg7[%c0, %c0_2] : memref<16x128xf32, #tpu.memory_space<vmem>>, vector<16x128xf32>
    %c0_3 = arith.constant 0 : index
    %c0_4 = arith.constant 0 : index
    %7 = vector.load %arg6[%c0_3, %c0_4] : memref<16x128xf32, #tpu.memory_space<vmem>>, vector<16x128xf32>
    %8 = arith.subf %6, %7 : vector<16x128xf32>
    %c0_5 = arith.constant 0 : index
    %c0_6 = arith.constant 0 : index
    %9 = vector.load %arg5[%c0_5, %c0_6] : memref<16x128xf32, #tpu.memory_space<vmem>>, vector<16x128xf32>
    %10 = arith.mulf %8, %9 : vector<16x128xf32>
    %cst = arith.constant dense<0.000000e+00> : vector<16xf32>
    %11 = vector.multi_reduction <add>, %10, %cst [1] : vector<16x128xf32> to vector<16xf32>
    %12 = vector.shape_cast %11 : vector<16xf32> to vector<16x1xf32>
    %cst_7 = arith.constant 0.000000e+00 : f32
    %13 = vector.broadcast %cst_7 : f32 to vector<16x1xf32>
    %14 = arith.maximumf %12, %13 : vector<16x1xf32>
    %15 = math.absf %12 : vector<16x1xf32>
    %cst_8 = arith.constant 0.000000e+00 : f32
    %16 = vector.broadcast %cst_8 : f32 to vector<16x1xf32>
    %17 = arith.subf %16, %15 : vector<16x1xf32>
    %18 = math.exp %17 : vector<16x1xf32>
    %19 = math.log1p %18 : vector<16x1xf32>
    %20 = arith.addf %14, %19 : vector<16x1xf32>
    %c16_i32 = arith.constant 16 : i32
    %21 = arith.muli %arg0, %c16_i32 : i32
    %22 = tpu.iota {dimensions = array<i32: 0>} : vector<16x1xi32>
    %23 = vector.broadcast %21 : i32 to vector<16x1xi32>
    %24 = arith.addi %23, %22 : vector<16x1xi32>
    %c0_9 = arith.constant 0 : index
    %c0_10 = arith.constant 0 : index
    %25 = vector.load %arg1[%c0_9, %c0_10] : memref<16x1xf32, #tpu.memory_space<vmem>>, vector<16x1xf32>
    %c24_i32 = arith.constant 24 : i32
    %26 = vector.broadcast %c24_i32 : i32 to vector<16x1xi32>
    %27 = arith.cmpi slt, %24, %26 : vector<16x1xi32>
    %cst_11 = arith.constant 0.000000e+00 : f32
    %28 = vector.broadcast %cst_11 : f32 to vector<16x1xf32>
    %29 = arith.select %27, %20, %28 : vector<16x1xi1>, vector<16x1xf32>
    %30 = arith.mulf %29, %25 : vector<16x1xf32>
    %31 = vector.shape_cast %30 : vector<16x1xf32> to vector<1x16x1xf32>
    %cst_12 = arith.constant dense<0.000000e+00> : vector<1xf32>
    %32 = vector.multi_reduction <add>, %31, %cst_12 [1, 2] : vector<1x16x1xf32> to vector<1xf32>
    %33 = vector.shape_cast %32 : vector<1xf32> to vector<1x1x1xf32>
    %34 = vector.extract %33[0, 0, 0] : f32 from vector<1x1x1xf32>
    %35 = vector.shape_cast %25 : vector<16x1xf32> to vector<1x16x1xf32>
    %cst_13 = arith.constant dense<0.000000e+00> : vector<1xf32>
    %36 = vector.multi_reduction <add>, %35, %cst_13 [1, 2] : vector<1x16x1xf32> to vector<1xf32>
    %37 = vector.shape_cast %36 : vector<1xf32> to vector<1x1x1xf32>
    %38 = vector.extract %37[0, 0, 0] : f32 from vector<1x1x1xf32>
    %39 = tpu.iota {dimensions = array<i32: 1>} : vector<1x2x128xi32>
    %c0_i32_14 = arith.constant 0 : i32
    %40 = vector.broadcast %c0_i32_14 : i32 to vector<1x2x128xi32>
    %41 = arith.cmpi eq, %39, %40 : vector<1x2x128xi32>
    %42 = vector.broadcast %34 : f32 to vector<1x2x128xf32>
    %43 = vector.broadcast %38 : f32 to vector<1x2x128xf32>
    %44 = arith.select %41, %42, %43 : vector<1x2x128xi1>, vector<1x2x128xf32>
    %c0_15 = arith.constant 0 : index
    %c0_16 = arith.constant 0 : index
    %c0_17 = arith.constant 0 : index
    %45 = vector.load %arg4[%c0_15, %c0_16, %c0_17] : memref<1x2x128xf32, #tpu.memory_space<vmem>>, vector<1x2x128xf32>
    tpu.vector_store %arg4[%c0_15, %c0_16, %c0_17], %44 {strides = array<i32>} : memref<1x2x128xf32, #tpu.memory_space<vmem>>, vector<1x2x128xf32>,
    return
  }
  func.func @transform_0(%arg0: i32) -> (i32, i32) {
    %c0_i32 = arith.constant 0 : i32
    %c0_i32_0 = arith.constant 0 : i32
    return %arg0, %c0_i32 : i32, i32
  }
  func.func @transform_3(%arg0: i32) -> (i32, i32, i32) {
    %c0_i32 = arith.constant 0 : i32
    %c0_i32_0 = arith.constant 0 : i32
    %c0_i32_1 = arith.constant 0 : i32
    return %arg0, %c0_i32, %c0_i32_0 : i32, i32, i32
  }
}

</mosaic_0001>

<llo_original>
// kernel: tpu_custom_call.1
$region0: #{tpu_custom_call.1}
  #allocation0 [shape = 'u32[]', space=smem, size = 0x4, offset = 0x4, fixed_abs, tag = 'smem constant byte address 0x4 - core index']
  #allocation1 [shape = 'u32[144,128]{1,0:T(1,128)}', space=vmem, size = 0x12000, scoped, tag = 'internal scratch']
  #allocation2 [shape = 'f32[16,128]{1,0:T(8,128)}', space=vmem, size = 0x2000, scoped, tag = 'scratch operand']
  #allocation3 [shape = 'f32[16,128]{1,0:T(8,128)}', space=vmem, size = 0x2000, scoped, tag = 'scratch operand']
  #allocation4 [shape = 'f32[16,128]{1,0:T(8,128)}', space=vmem, size = 0x2000, scoped, tag = 'scratch operand']
  #allocation5 [shape = 's32[3]{0}', space=sflag, size = 0xc, scoped, tag = 'scratch operand']
  #allocation8 [shape = 's32[]', space=sflag, size = 0x4, offset = 0, fixed_abs, tag = 'sflag constant byte address 0x0 - dummy sync flag']
  #allocation9 [shape = 's32[]', space=sflag, size = 0x4, offset = 0, fixed_abs, tag = 'sflag constant byte address 0x0 - dummy sync flag']
  #allocation10 [shape = 'u32[]', space=smem, size = 0x4, offset = 0x44, fixed_abs, tag = 'smem constant byte address 0x44 - assertion arg 0']
  #allocation11 [shape = 'u32[]', space=smem, size = 0x4, offset = 0x48, fixed_abs, tag = 'smem constant byte address 0x48 - assertion arg 1']
  #allocation12 [shape = 's32[]', space=sflag, size = 0x4, offset = 0, fixed_abs, tag = 'sflag constant byte address 0x0 - dummy sync flag']
  #allocation13 [shape = 's32[]', space=sflag, size = 0x4, offset = 0, fixed_abs, tag = 'sflag constant byte address 0x0 - dummy sync flag']
  #allocation14 [shape = 's32[]', space=sflag, size = 0x4, offset = 0, fixed_abs, tag = 'sflag constant byte address 0x0 - dummy sync flag']
  #allocation15 [shape = 's32[]', space=sflag, size = 0x4, offset = 0, fixed_abs, tag = 'sflag constant byte address 0x0 - dummy sync flag']
  #allocation16 [shape = 's32[]', space=sflag, size = 0x4, offset = 0, fixed_abs, tag = 'sflag constant byte address 0x0 - dummy sync flag']
  #allocation17 [shape = 's32[]', space=sflag, size = 0x4, offset = 0, fixed_abs, tag = 'sflag constant byte address 0x0 - dummy sync flag']
  #allocation18 [shape = 's32[]', space=sflag, size = 0x4, offset = 0, fixed_abs, tag = 'sflag constant byte address 0x0 - dummy sync flag']
  #allocation19 [shape = 's32[]', space=sflag, size = 0x4, offset = 0, fixed_abs, tag = 'sflag constant byte address 0x0 - dummy sync flag']
  #allocation20 [shape = 's32[]', space=sflag, size = 0x4, offset = 0, fixed_abs, tag = 'sflag constant byte address 0x0 - dummy sync flag']
  #allocation21 [shape = 's32[]', space=sflag, size = 0x4, offset = 0, fixed_abs, tag = 'sflag constant byte address 0x0 - dummy sync flag']
  %s0 = inlined_call_operand.vmem [shape: f32[32,1], index: 0, kind: input, shape index: {}]
  %s1 = inlined_call_operand.hbm [shape: f32[40,128], index: 1, kind: input, shape index: {}]
  %s2 = inlined_call_operand.hbm [shape: f32[64,128], index: 2, kind: input, shape index: {}]
  %s3 = inlined_call_operand.hbm [shape: f32[2,2,128], index: 3, kind: output, shape index: {}]
  %s4 = sld [smem:[#allocation0]]
  $region69: #{tpu_custom_call.1} parent=0
    _
  %s6 = ssub.s32 1, %s4
  %s7 = scalar_select 0, %s6, %s4
  $region1: #{tpu_custom_call.1} parent=0
    #allocation6 [shape = 'u8[2048]{0}', space=vmem, size = 0x800, scoped, tag = 'output window, operand 0']
    #allocation7 [shape = 's32[2]{0}', space=sflag, size = 0x8, scoped, tag = 'scoped memory for tpu_custom_call.1']
    %8 = vsyncpa [#allocation7], 0
    %s9 = scalar_lea.sflag [#allocation7], 1
    %10 = vsyncpa %s9, 0
    loop: start=0, step=1, limit=4
    $region2: #{tpu_custom_call.1} parent=1 // loop_pre_header
      _
    $region3: #{tpu_custom_call.1} parent=1 // loop_header
      %s12 = sphi 0, %s16
      %p13 = scmp.ge.s32.totalorder %s12, 4
      %s22 = sphi 0, %s24
      %s25 = sphi 0, %s22
      %s26 = sphi 0, %s25
      %s42 = sphi 0, %s26
      %s48 = sphi 0, %s50
      %s51 = sphi 0, %s48
      %s52 = sphi 0, %s51
      %s68 = sphi 0, %s52
    $region4: #{tpu_custom_call.1} parent=1 // loop_header_branch
      %15 = sbr.rel (%p13) target = $region8
    $region5: #{tpu_custom_call.1} parent=1 // loop_body
      %s17 = ssub.s32 %s12, 1
      %s18 = ssub.s32 %s12, 2
      %s19 = sadd.s32 %s12, 1
      %s20 = ssub.s32 %s12, %s19
      %p21 = scmp.eq.s32.totalorder %s20, 0
      %s23 = sadd.s32 %s22, 1
      %s24 = scalar_select %p21, %s22, %s23
      %p27 = pneg %p21
      %p28 = scmp.eq.s32.totalorder %s12, 1
      %p29 = por %p27, %p28
      %p30 = scmp.ne.s32.totalorder %s22, %s25
      %p31 = scmp.eq.s32.totalorder %s12, 0
      %p32 = por %p30, %p31
      %p33 = scmp.ne.s32.totalorder %s22, %s25
      %p34 = scmp.eq.s32.totalorder %s17, 1
      %p35 = por %p33, %p34
      %p36 = scmp.ne.s32.totalorder %s25, %s26
      %p37 = scmp.eq.s32.totalorder %s17, 0
      %p38 = por %p36, %p37
      %p39 = scmp.ne.s32.totalorder %s25, %s26
      %p40 = scmp.eq.s32.totalorder %s18, 1
      %p41 = por %p39, %p40
      %p43 = scmp.ne.s32.totalorder %s26, %s42
      %p44 = scmp.eq.s32.totalorder %s18, 0
      %p45 = por %p43, %p44
      %s46 = ssub.s32 %s12, %s19
      %p47 = scmp.eq.s32.totalorder %s46, 0
      %s49 = sadd.s32 %s48, 1
      %s50 = scalar_select %p47, %s48, %s49
      %p53 = pneg %p47
      %p54 = scmp.eq.s32.totalorder %s12, 1
      %p55 = por %p53, %p54
      %p56 = scmp.ne.s32.totalorder %s48, %s51
      %p57 = scmp.eq.s32.totalorder %s12, 0
      %p58 = por %p56, %p57
      %p59 = scmp.ne.s32.totalorder %s48, %s51
      %p60 = scmp.eq.s32.totalorder %s17, 1
      %p61 = por %p59, %p60
      %p62 = scmp.ne.s32.totalorder %s51, %s52
      %p63 = scmp.eq.s32.totalorder %s17, 0
      %p64 = por %p62, %p63
      %p65 = scmp.ne.s32.totalorder %s51, %s52
      %p66 = scmp.eq.s32.totalorder %s18, 1
      %p67 = por %p65, %p66
      %p69 = scmp.ne.s32.totalorder %s52, %s68
      %p70 = scmp.eq.s32.totalorder %s18, 0
      %p71 = por %p69, %p70
      %p72 = scmp.le.s32.totalorder 1, %s12
      %p73 = scmp.lt.s32.totalorder %s12, 3
      %p74 = pnand %p72, %p73
      %p75 = pneg %p74
      // Predicated region
      $region9: #{tpu_custom_call.1} parent=5 // pred_check
        _
      $region10: #{tpu_custom_call.1} parent=5 // pred_check_branch
        %77 = sbr.rel (%p74) target = $region12
      $region11: #{tpu_custom_call.1} parent=5 // pred_region
        %s78 = ssub.s32 %s12, 1
      $region12: #{tpu_custom_call.1} parent=5 // pred_fallthru
        _
      %p79 = scmp.lt.s32.totalorder %s12, 2
      // Predicated region
      $region13: #{tpu_custom_call.1} parent=5 // pred_check
        %p80 = pneg %p79
      $region14: #{tpu_custom_call.1} parent=5 // pred_check_branch
        %82 = sbr.rel (%p80) target = $region16
      $region15: #{tpu_custom_call.1} parent=5 // pred_region
        // Predicated region
        $region17: #{tpu_custom_call.1} parent=15 // pred_check
          %p83 = pneg %p32
        $region18: #{tpu_custom_call.1} parent=15 // pred_check_branch
          %85 = sbr.rel (%p83) target = $region20
        $region19: #{tpu_custom_call.1} parent=15 // pred_region
          %s86 = smul.u32 2, %s12
          %p87 = scmp.lt.s32.totalorder %s86, 3
          %s88 = scalar_select %p87, %s86, 3
          %s89 = smul.addr %s88, 8
          %s90 = scalar_lea.vmem %s0, %s89
          %s91 = smul.u32 2, %s12
        $region20: #{tpu_custom_call.1} parent=15 // pred_fallthru
          _
      $region16: #{tpu_custom_call.1} parent=5 // pred_fallthru
        _
      %p92 = scmp.le.s32.totalorder 1, %s12
      %p93 = scmp.lt.s32.totalorder %s12, 3
      %p94 = pnand %p92, %p93
      %p95 = pneg %p94
      // Predicated region
      $region21: #{tpu_custom_call.1} parent=5 // pred_check
        _
      $region22: #{tpu_custom_call.1} parent=5 // pred_check_branch
        %97 = sbr.rel (%p94) target = $region24
      $region23: #{tpu_custom_call.1} parent=5 // pred_region
        %s98 = ssub.s32 %s12, 1
        %s99 = smul.u32 2, %s17
        %p100 = scmp.lt.s32.totalorder %s99, 3
        %s101 = scalar_select %p100, %s99, 3
        %s102 = smul.addr %s101, 8
        %s103 = scalar_lea.vmem %s0, %s102
        %p104 = pneg %p38
        %p105 = pneg %p35
        %p106 = pneg %p64
        %p107 = pneg %p61
        %s108 = sand.u32 %s51, 1
        %s109 = scalar_lea.sflag [#allocation7], %s108
        %s110 = sand.u32 %s51, 1
        %s111 = smul.addr %s110, 2
        %s112 = scalar_lea.vmem [#allocation6], %s111
        %s113 = smul.u32 2, %s17
        %p114 = scmp.lt.s32.totalorder %s113, 3
        %s115 = scalar_select %p114, %s113, 3
        %s116 = smul.addr %s115, 8
        %s117 = scalar_lea.vmem %s0, %s116
        %s118 = smul.u32 2, %s17
        %p119 = scmp.lt.s32.totalorder %s17, 1
        // Predicated region
        $region25: #{tpu_custom_call.1} parent=23 // pred_check
          %p120 = pneg %p119
        $region26: #{tpu_custom_call.1} parent=23 // pred_check_branch
          %122 = sbr.rel (%p120) target = $region28
        $region27: #{tpu_custom_call.1} parent=23 // pred_region
          %s123 = smul.u32 %s17, 16
          %s124 = sadd.s32 %s123, 16
          %s125 = sadd.s32 %s123, 40
          %s126 = smul.addr %s124, 16
          %s127 = scalar_lea.hbm %s1, %s126
          // Predicated region
          $region29: #{tpu_custom_call.1} parent=27 // pred_check
            _
          $region30: #{tpu_custom_call.1} parent=27 // pred_check_branch
            %129 = sbr.rel target = $region32
          $region31: #{tpu_custom_call.1} parent=27 // pred_region
            %130 = sst [smem:[#allocation10]] [#allocation9]
            %131 = sst [smem:[#allocation11]] [#allocation8]
          $region32: #{tpu_custom_call.1} parent=27 // pred_fallthru
            _
          %133 = shalt.err (0)
          %s135 = sshll.u32 [#allocation2], 4
          %s136 = int_to_ptr.vmem [resolvable:$true] %s135
          %138 = dma.hbm_to_vmem [thread:$0]  %s127, 256, %s136, [#allocation5]
          %s139 = smul.addr %s124, 16
          %s140 = scalar_lea.hbm %s2, %s139
          %s141 = scalar_lea.sflag [#allocation5], 1
          // Predicated region
          $region33: #{tpu_custom_call.1} parent=27 // pred_check
            _
          $region34: #{tpu_custom_call.1} parent=27 // pred_check_branch
            %143 = sbr.rel target = $region36
          $region35: #{tpu_custom_call.1} parent=27 // pred_region
            %144 = sst [smem:[#allocation10]] [#allocation13]
            %145 = sst [smem:[#allocation11]] [#allocation12]
          $region36: #{tpu_custom_call.1} parent=27 // pred_fallthru
            _
          %147 = shalt.err (0)
          %s149 = sshll.u32 [#allocation3], 4
          %s150 = int_to_ptr.vmem [resolvable:$true] %s149
          %152 = dma.hbm_to_vmem [thread:$0]  %s140, 256, %s150, %s141
          %s153 = smul.addr %s125, 16
          %s154 = scalar_lea.hbm %s2, %s153
          %s155 = scalar_lea.sflag [#allocation5], 2
          // Predicated region
          $region37: #{tpu_custom_call.1} parent=27 // pred_check
            _
          $region38: #{tpu_custom_call.1} parent=27 // pred_check_branch
            %157 = sbr.rel target = $region40
          $region39: #{tpu_custom_call.1} parent=27 // pred_region
            %158 = sst [smem:[#allocation10]] [#allocation15]
            %159 = sst [smem:[#allocation11]] [#allocation14]
          $region40: #{tpu_custom_call.1} parent=27 // pred_fallthru
            _
          %161 = shalt.err (0)
          %s163 = sshll.u32 [#allocation4], 4
          %s164 = int_to_ptr.vmem [resolvable:$true] %s163
          %166 = dma.hbm_to_vmem [thread:$0]  %s154, 256, %s164, %s155
          %s167 = smul.u32 16, 1
          %s168 = sshll.u32 %s167, 4
          %169 = dma.done [#allocation5], %s168
          %s170 = sshll.u32 %s167, 4
          %171 = dma.done %s141, %s170
          %s172 = sshll.u32 %s167, 4
          %173 = dma.done %s155, %s172
        $region28: #{tpu_custom_call.1} parent=23 // pred_fallthru
          _
        %p174 = scmp.eq.s32.totalorder %s17, 1
        // Predicated region
        $region41: #{tpu_custom_call.1} parent=23 // pred_check
          %p175 = pneg %p174
        $region42: #{tpu_custom_call.1} parent=23 // pred_check_branch
          %177 = sbr.rel (%p175) target = $region44
        $region43: #{tpu_custom_call.1} parent=23 // pred_region
          %s178 = smul.u32 %s17, 16
          %s179 = sadd.s32 %s178, 16
          %s180 = sadd.s32 %s178, 40
          %s181 = smul.addr %s179, 16
          %s182 = scalar_lea.hbm %s1, %s181
          // Predicated region
          $region45: #{tpu_custom_call.1} parent=43 // pred_check
            _
          $region46: #{tpu_custom_call.1} parent=43 // pred_check_branch
            %184 = sbr.rel target = $region48
          $region47: #{tpu_custom_call.1} parent=43 // pred_region
            %185 = sst [smem:[#allocation10]] [#allocation17]
            %186 = sst [smem:[#allocation11]] [#allocation16]
          $region48: #{tpu_custom_call.1} parent=43 // pred_fallthru
            _
          %188 = shalt.err (0)
          %s190 = sshll.u32 [#allocation2], 4
          %s191 = int_to_ptr.vmem [resolvable:$true] %s190
          %193 = dma.hbm_to_vmem [thread:$0]  %s182, 128, %s191, [#allocation5]
          %s194 = smul.addr %s179, 16
          %s195 = scalar_lea.hbm %s2, %s194
          %s196 = scalar_lea.sflag [#allocation5], 1
          // Predicated region
          $region49: #{tpu_custom_call.1} parent=43 // pred_check
            _
          $region50: #{tpu_custom_call.1} parent=43 // pred_check_branch
            %198 = sbr.rel target = $region52
          $region51: #{tpu_custom_call.1} parent=43 // pred_region
            %199 = sst [smem:[#allocation10]] [#allocation19]
            %200 = sst [smem:[#allocation11]] [#allocation18]
          $region52: #{tpu_custom_call.1} parent=43 // pred_fallthru
            _
          %202 = shalt.err (0)
          %s204 = sshll.u32 [#allocation3], 4
          %s205 = int_to_ptr.vmem [resolvable:$true] %s204
          %207 = dma.hbm_to_vmem [thread:$0]  %s195, 128, %s205, %s196
          %s208 = smul.addr %s180, 16
          %s209 = scalar_lea.hbm %s2, %s208
          %s210 = scalar_lea.sflag [#allocation5], 2
          // Predicated region
          $region53: #{tpu_custom_call.1} parent=43 // pred_check
            _
          $region54: #{tpu_custom_call.1} parent=43 // pred_check_branch
            %212 = sbr.rel target = $region56
          $region55: #{tpu_custom_call.1} parent=43 // pred_region
            %213 = sst [smem:[#allocation10]] [#allocation21]
            %214 = sst [smem:[#allocation11]] [#allocation20]
          $region56: #{tpu_custom_call.1} parent=43 // pred_fallthru
            _
          %216 = shalt.err (0)
          %s218 = sshll.u32 [#allocation4], 4
          %s219 = int_to_ptr.vmem [resolvable:$true] %s218
          %221 = dma.hbm_to_vmem [thread:$0]  %s209, 128, %s219, %s210
          %s222 = smul.u32 8, 1
          %s223 = sshll.u32 %s222, 4
          %224 = dma.done [#allocation5], %s223
          %s225 = sshll.u32 %s222, 4
          %226 = dma.done %s196, %s225
          %s227 = sshll.u32 %s222, 4
          %228 = dma.done %s210, %s227
        $region44: #{tpu_custom_call.1} parent=23 // pred_fallthru
          _
        %v229 = vld [vmem:[#allocation4] sm:$0xff]
        %v230 = vld [vmem:[#allocation4 + $0x8] sm:$0xff]
        %v231 = vld [vmem:[#allocation3] sm:$0xff]
        %v232 = vld [vmem:[#allocation3 + $0x8] sm:$0xff]
        %v233 = vsub.f32 %v229, %v231
        %v234 = vsub.f32 %v230, %v232
        %v235 = vld [vmem:[#allocation2] sm:$0xff]
        %v236 = vld [vmem:[#allocation2 + $0x8] sm:$0xff]
        %v237 = vmul.f32 %v233, %v235
        %v238 = vmul.f32 %v234, %v236
        %239 = vadd.xlane.f32.xlu0 %v237
        %v240 = vpop.xlane.xlu0 %239
        %241 = vadd.xlane.f32.xlu0 %v238
        %v242 = vpop.xlane.xlu0 %241
        %v243 = vmax.f32 %v240, 0.0
        %v244 = vmax.f32 %v242, 0.0
        %v245 = vand.u32 2147483647, %v240
        %v246 = vand.u32 2147483647, %v242
        %v247 = vsub.f32 0.0, %v245
        %v248 = vsub.f32 0.0, %v246
        %v249 = vmul.f32 %v247, 1.442695
        %v250 = vpow.pop %v249
        %v251 = vmul.f32 %v248, 1.442695
        %v252 = vpow.pop %v251
        %v253 = vadd.f32 %v250, 1.0
        %v254 = vlog2.pop %v253
        %v255 = vmul.f32 %v254, 0.6931472
        %v256 = vmul.f32 -0.5, %v250
        %v257 = vadd.f32 %v256, 1.0
        %v258 = vmul.f32 %v257, %v250
        %v259 = vand.u32 2147483647, %v250
        %vm260 = vcmp.lt.f32.partialorder %v259, 0.0004427343
        %v261 = vsel %vm260, %v258, %v255
        %v262 = vadd.f32 %v252, 1.0
        %v263 = vlog2.pop %v262
        %v264 = vmul.f32 %v263, 0.6931472
        %v265 = vmul.f32 -0.5, %v252
        %v266 = vadd.f32 %v265, 1.0
        %v267 = vmul.f32 %v266, %v252
        %v268 = vand.u32 2147483647, %v252
        %vm269 = vcmp.lt.f32.partialorder %v268, 0.0004427343
        %v270 = vsel %vm269, %v267, %v264
        %v271 = vadd.f32 %v243, %v261
        %v272 = vadd.f32 %v244, %v270
        %s273 = smul.u32 %s17, 16
        %v274 = vlaneseq
        %v275 = vshrl.u32 %v274, 7
        %v276 = vadd.s32 %v275, 8
        %v277 = vstv %s273
        %v278 = vadd.s32 %v277, %v275
        %v279 = vadd.s32 %v277, %v276
        %v280 = vld [vmem:[%s117] sm:$0xff]
        %v281 = vld [vmem:[%s117 + $0x8] sm:$0xff]
        %vm282 = vcmp.lt.s32.totalorder %v278, 24
        %vm283 = vcmp.lt.s32.totalorder %v279, 24
        %v284 = vsel %vm282, %v271, 0.0
        %v285 = vsel %vm283, %v272, 0.0
        %v286 = vmul.f32 %v284, %v280
        %v287 = vmul.f32 %v285, %v281
        %vm288 = vcmask 7168
        %v289 = vsel %vm288, %v286, 0.0
        %v290 = vsel %vm288, %v287, 0.0
        %v291 = vadd.f32 %v289, %v290
        %292 = vadd.xlane.f32.xlu0 %v291
        %v293 = vpop.xlane.xlu0 %292
        %v294 = vrot.slane %v293, 4
        %v295 = vadd.f32 %v293, %v294
        %v296 = vrot.slane %v295, 2
        %v297 = vadd.f32 %v295, %v296
        %v298 = vrot.slane %v297, 1
        %v299 = vadd.f32 %v297, %v298
        %s300 = vtos %v299
        %v301 = vsel %vm288, %v280, 0.0
        %v302 = vsel %vm288, %v281, 0.0
        %v303 = vadd.f32 %v301, %v302
        %304 = vadd.xlane.f32.xlu0 %v303
        %v305 = vpop.xlane.xlu0 %304
        %v306 = vrot.slane %v305, 4
        %v307 = vadd.f32 %v305, %v306
        %v308 = vrot.slane %v307, 2
        %v309 = vadd.f32 %v307, %v308
        %v310 = vrot.slane %v309, 1
        %v311 = vadd.f32 %v309, %v310
        %s312 = vtos %v311
        %vm313 = vcmp.eq.s32.totalorder %v275, 0
        %v314 = vstv %s300
        %v315 = vstv %s312
        %v316 = vsel %vm313, %v314, %v315
        %317 = vst [vmem:[%s112] sm:$0x3] %v316
        %s318 = sand.u32 %s51, 1
        %s319 = scalar_lea.sflag [#allocation7], %s318
        %s320 = sand.u32 %s51, 1
        %s321 = smul.addr %s320, 2
        %s322 = scalar_lea.vmem [#allocation6], %s321
        // Predicated region
        $region57: #{tpu_custom_call.1} parent=23 // pred_check
          %p323 = pneg %p61
        $region58: #{tpu_custom_call.1} parent=23 // pred_check_branch
          %325 = sbr.rel (%p323) target = $region60
        $region59: #{tpu_custom_call.1} parent=23 // pred_region
          %s327 = ssub.s32 32, 32
          %328 = vsyncadd %s319, %s327
          %s329 = smul.addr %s17, 32
          %s330 = scalar_lea.hbm %s3, %s329
          %s332 = sshll.u32 %s322, 4
          %s333 = int_to_ptr.vmem [resolvable:$true] %s332
          %335 = dma.vmem_to_hbm [thread:$0]  %s333, 32, %s330, %s319
        $region60: #{tpu_custom_call.1} parent=23 // pred_fallthru
          _
      $region24: #{tpu_custom_call.1} parent=5 // pred_fallthru
        _
      %p336 = scmp.le.s32.totalorder 2, %s12
      // Predicated region
      $region61: #{tpu_custom_call.1} parent=5 // pred_check
        %p337 = pneg %p336
      $region62: #{tpu_custom_call.1} parent=5 // pred_check_branch
        %339 = sbr.rel (%p337) target = $region64
      $region63: #{tpu_custom_call.1} parent=5 // pred_region
        %s340 = ssub.s32 %s12, 2
        // Predicated region
        $region65: #{tpu_custom_call.1} parent=63 // pred_check
          %p341 = pneg %p67
        $region66: #{tpu_custom_call.1} parent=63 // pred_check_branch
          %343 = sbr.rel (%p341) target = $region68
        $region67: #{tpu_custom_call.1} parent=63 // pred_region
          %s344 = sand.u32 %s52, 1
          %s345 = scalar_lea.sflag [#allocation7], %s344
          %s346 = sand.u32 %s52, 1
          %s347 = smul.addr %s346, 2
          %s348 = scalar_lea.vmem [#allocation6], %s347
          %349 = dma.done %s345, 32
        $region68: #{tpu_custom_call.1} parent=63 // pred_fallthru
          _
      $region64: #{tpu_custom_call.1} parent=5 // pred_fallthru
        _
    $region6: #{tpu_custom_call.1} parent=1 // loop_footer
      %s16 = sadd.s32 1, %s12
    $region7: #{tpu_custom_call.1} parent=1 // loop_footer_branch
      %11 = sbr.rel target = $region3
    $region8: #{tpu_custom_call.1} parent=1 // loop_exit
      _
    %350 = vsyncpa [#allocation7], 1
    %s351 = scalar_lea.sflag [#allocation7], 1
    %352 = vsyncpa %s351, 1
  %353 = vsyncmov [#allocation5]
  %s354 = vpop.sfrf %353
  %p355 = scmp.eq.s32.totalorder %s354, 0
  %p356 = pneg %p355
  %358 = shalt.err (%p356)
  %s359 = scalar_lea.sflag [#allocation5], 1
  %360 = vsyncmov %s359
  %s361 = vpop.sfrf %360
  %p362 = scmp.eq.s32.totalorder %s361, 0
  %p363 = pneg %p362
  %365 = shalt.err (%p363)
  %s366 = scalar_lea.sflag [#allocation5], 2
  %367 = vsyncmov %s366
  %s368 = vpop.sfrf %367
  %p369 = scmp.eq.s32.totalorder %s368, 0
  %p370 = pneg %p369
  %372 = shalt.err (%p370)

</llo_original>
